<compile_context>
chip_gen: v6e
topology: v6e:2x2x1
jax: 0.10.0
libtpu: 0.0.40
codegen_flags: <defaults>
</compile_context>

<pallas_src>
import functools

import jax
import jax.numpy as jnp
import numpy as np
from jax.experimental import pallas as pl
from jax.experimental.pallas import tpu as pltpu

LEAKY_SLOPE = 0.2
NEG_BIG = -1e30


def _round_up(x, m):
    return ((x + m - 1) // m) * m


def _cnn_kernel(x_ref, wblk_ref, cbias_ref, mask_ref, wout_ref, bout_ref,
                out_ref, *, tb, p, f, w_max):
    """Fused conv (per-tap matmuls) -> leaky_relu -> masked max-pool -> linear."""
    x = x_ref[...]                                   # (TB, Lp_pad, F)
    wblk = wblk_ref[...]                             # (w_max*F, NC)
    nc = wblk.shape[1]

    # Conv2d(1, C, (w, F), padding=(1, 0)) for every window, expressed as
    # w_max accumulating MXU passes over per-tap weight slices.  Taps t >= w
    # have zero weight rows for that window's column block.
    acc = jnp.dot(x[:, 0:p, :].reshape(tb * p, f), wblk[0:f, :],
                  preferred_element_type=jnp.float32)
    for t in range(1, w_max):
        acc = acc + jnp.dot(x[:, t:t + p, :].reshape(tb * p, f),
                            wblk[t * f:(t + 1) * f, :],
                            preferred_element_type=jnp.float32)

    conv = acc + cbias_ref[...]                      # (TB*P, NC) + (1, NC)
    act = jnp.where(conv > 0, conv, LEAKY_SLOPE * conv)     # leaky_relu(0.2)

    # -1e30 on invalid conv rows (per window), then full-length max-pool.
    act = act.reshape(tb, p, nc) + mask_ref[...]     # (TB, P, NC) + (P, NC)
    pooled = jnp.max(act, axis=1)                    # (TB, NC)

    # Fused final linear; single lane-dense (TB, 128) store.
    out_ref[...] = (jnp.dot(pooled, wout_ref[...],
                            preferred_element_type=jnp.float32)
                    + bout_ref[...])


def cnn_discriminator_forward(params, prob_sequence, window_sizes,
                              feature_size, input_mask=None):
    """Forward pass matching CNN_Auxiliary_Discriminator.forward defaults."""
    window_sizes = tuple(window_sizes)
    B = prob_sequence.shape[0]
    x = prob_sequence.reshape(B, -1, feature_size)
    if input_mask is not None:
        x = x * input_mask
    x = x.astype(jnp.float32)
    L = x.shape[1]
    F = feature_size

    w_max = max(window_sizes)
    w_min = min(window_sizes)
    assert all(w <= L + 2 for w in window_sizes), (
        "window size larger than padded sequence length")

    C = params[f"conv{window_sizes[0]}_b"].shape[0]            # filter_size
    n_win = len(window_sizes)
    NC = n_win * C
    O = params["out_w"].shape[0]
    O_pad = _round_up(O, 128)                                  # lane-dense out

    # Conv output positions (padded to a sublane multiple) and padded rows
    # needed per sample so every conv row j < P can read taps j..j+w_max-1.
    P = _round_up(L + 3 - w_min, 8)
    Lp_pad = _round_up(P + w_max - 1, 8)

    # --- batch tiling: big tiles (amortize per-step overhead), VMEM-capped ---
    B_pad8 = _round_up(B, 8)
    if B <= 8:
        n_tiles, TB = 1, B
    else:
        lanes_f = _round_up(F, 128)
        lanes_nc = _round_up(NC, 128)
        bytes_per_sample = 4 * (2 * Lp_pad * lanes_f     # x tile, double-buffered
                                + 4 * P * lanes_nc       # conv/act f32 intermediates
                                + 2 * P * lanes_f)       # tap-slice temporaries
        budget = 24 * 1024 * 1024                        # fits v7x 64 MiB VMEM
        tb_cap = max(8, min(1024, (budget // bytes_per_sample) // 8 * 8))
        n_tiles = -(-B_pad8 // tb_cap)
        if n_tiles == 1 and B_pad8 >= 128:
            n_tiles = 2                                  # feed both v7x TensorCores
        TB = _round_up(-(-B_pad8 // n_tiles), 8)
    B_pad = TB * n_tiles
    if B_pad != B:
        x = jnp.pad(x, ((0, B_pad - B), (0, 0), (0, 0)))

    # torch Conv2d padding=(1, 0): one zero row each side of the sequence,
    # plus extra zero tail rows up to Lp_pad (invalid rows are masked later).
    x_pad = jnp.pad(x, ((0, 0), (1, Lp_pad - (L + 1)), (0, 0)))  # (B_pad, Lp_pad, F)

    # --- packed per-tap conv weights / one bias row ---
    w_blocks, biases = [], []
    for w in window_sizes:
        Wc = params[f"conv{w}_w"]                              # (C, w, F)
        Wt = jnp.transpose(Wc, (1, 2, 0)).reshape(w * F, C)    # rows = tap*F + f
        Wt = jnp.pad(Wt, ((0, (w_max - w) * F), (0, 0)))       # zero taps >= w
        w_blocks.append(Wt)
        biases.append(params[f"conv{w}_b"])
    w_block = jnp.concatenate(w_blocks, axis=1)                # (w_max*F, NC)
    conv_bias = jnp.concatenate(biases).reshape(1, NC)         # (1, NC)

    # --- additive mask: 0 on valid conv rows, -1e30 elsewhere (per window) ---
    mask_np = np.full((P, NC), NEG_BIG, np.float32)
    for idx, w in enumerate(window_sizes):
        mask_np[: L + 3 - w, idx * C:(idx + 1) * C] = 0.0
    mask = jnp.asarray(mask_np)                                # (P, NC)

    # --- final linear, pre-transposed and padded to lane-dense width ---
    w_out_t = jnp.pad(params["out_w"].T, ((0, 0), (0, O_pad - O)))  # (NC, O_pad)
    b_out = jnp.pad(params["out_b"], (0, O_pad - O)).reshape(1, O_pad)

    kernel = functools.partial(_cnn_kernel, tb=TB, p=P, f=F, w_max=w_max)
    out = pl.pallas_call(
        kernel,
        out_shape=jax.ShapeDtypeStruct((B_pad, O_pad), jnp.float32),
        grid_spec=pltpu.PrefetchScalarGridSpec(
            num_scalar_prefetch=0,
            grid=(n_tiles,),
            in_specs=[
                pl.BlockSpec((TB, Lp_pad, F), lambda i: (i, 0, 0)),  # x (tiled)
                pl.BlockSpec((w_max * F, NC), lambda i: (0, 0)),     # conv weights
                pl.BlockSpec((1, NC), lambda i: (0, 0)),             # conv bias row
                pl.BlockSpec((P, NC), lambda i: (0, 0)),             # validity mask
                pl.BlockSpec((NC, O_pad), lambda i: (0, 0)),         # out weight (T)
                pl.BlockSpec((1, O_pad), lambda i: (0, 0)),          # out bias
            ],
            out_specs=pl.BlockSpec((TB, O_pad), lambda i: (i, 0)),
        ),
        compiler_params=pltpu.CompilerParams(
            dimension_semantics=("parallel",),
            vmem_limit_bytes=48 * 1024 * 1024),
    )(x_pad, w_block, conv_bias, mask, w_out_t, b_out)

    out = out[:B, :O]
    if O == 1:
        return out[:, 0]                                       # .squeeze(1)
    return out


def init_params(key, feature_size, filter_size, window_sizes, output_size=1):
    """Deterministic init matching PyTorch default uniform(-1/sqrt(fan_in), ..)."""
    params = {}
    for w in window_sizes:
        key, k1, k2 = jax.random.split(key, 3)
        fan_in = 1 * w * feature_size
        bound = 1.0 / np.sqrt(fan_in)
        params[f"conv{w}_w"] = jax.random.uniform(
            k1, (filter_size, w, feature_size), jnp.float32, -bound, bound)
        params[f"conv{w}_b"] = jax.random.uniform(
            k2, (filter_size,), jnp.float32, -bound, bound)
    key, k1, k2 = jax.random.split(key, 3)
    fan_in = filter_size * len(window_sizes)
    bound = 1.0 / np.sqrt(fan_in)
    params["out_w"] = jax.random.uniform(
        k1, (output_size, fan_in), jnp.float32, -bound, bound)
    params["out_b"] = jax.random.uniform(
        k2, (output_size,), jnp.float32, -bound, bound)
    return params


def reference_forward(params, prob_sequence, window_sizes, feature_size):
    """Pure-JAX reference mirroring the torch (NCHW) forward exactly."""
    B = prob_sequence.shape[0]
    x = prob_sequence.reshape(B, -1, feature_size).astype(jnp.float32)
    x = x[:, None, :, :]                                       # (B, 1, L, F)
    feats = []
    for w in window_sizes:
        Wc = params[f"conv{w}_w"][:, None, :, :]               # (C, 1, w, F)
        y = jax.lax.conv_general_dilated(
            x, Wc, window_strides=(1, 1), padding=((1, 1), (0, 0)),
            dimension_numbers=("NCHW", "OIHW", "NCHW"))
        y = y + params[f"conv{w}_b"][None, :, None, None]
        y = jnp.where(y > 0, y, LEAKY_SLOPE * y)               # leaky_relu(0.2)
        y = y[:, :, :, 0]                                      # squeeze(3)
        feats.append(jnp.max(y, axis=2))                       # max_pool1d(full)
    feat = jnp.concatenate(feats, axis=1)
    out = feat @ params["out_w"].T + params["out_b"]
    return out[:, 0]


if __name__ == "__main__":
    feature_size = 32
    filter_size = 16
    window_sizes = (2, 3, 4)
    L = 8

    key = jax.random.PRNGKey(0)
    kp, kx1, kx2 = jax.random.split(key, 3)
    params = init_params(kp, feature_size, filter_size, window_sizes)

    # Small-batch check (single tile path).
    prob_sequence = jax.random.uniform(kx1, (2, L, feature_size), jnp.float32)
    out = cnn_discriminator_forward(params, prob_sequence, window_sizes,
                                    feature_size)
    out = jax.block_until_ready(out)
    ref = reference_forward(params, prob_sequence, window_sizes, feature_size)
    np.testing.assert_allclose(np.asarray(out), np.asarray(ref),
                               rtol=1e-5, atol=1e-5)

    # Larger batch exercises the multi-tile / padded-batch path (grid >= 2).
    prob_sequence2 = jax.random.uniform(kx2, (200, L, feature_size), jnp.float32)
    out2 = cnn_discriminator_forward(params, prob_sequence2, window_sizes,
                                     feature_size)
    out2 = jax.block_until_ready(out2)
    ref2 = reference_forward(params, prob_sequence2, window_sizes, feature_size)
    np.testing.assert_allclose(np.asarray(out2), np.asarray(ref2),
                               rtol=1e-5, atol=1e-5)

    print("KERNEL_OK")
</pallas_src>

<mosaic_0001>
module attributes {stable_mosaic.version = 11 : i64} {
  func.func @_cnn_kernel(%arg0: i32, %arg1: memref<2x24x32xf32, #tpu.memory_space<vmem>>, %arg2: memref<128x48xf32, #tpu.memory_space<vmem>>, %arg3: memref<1x48xf32, #tpu.memory_space<vmem>>, %arg4: memref<16x48xf32, #tpu.memory_space<vmem>>, %arg5: memref<48x128xf32, #tpu.memory_space<vmem>>, %arg6: memref<1x128xf32, #tpu.memory_space<vmem>>, %arg7: memref<2x128xf32, #tpu.memory_space<vmem>>) attributes {dimension_semantics = [#tpu.dimension_semantics<parallel>], iteration_bounds = array<i64: 1>, scalar_prefetch = 0 : i64, scratch_operands = 0 : i64, tpu.core_type = #tpu.core_type<tc>, window_params = [{transform_indices = @transform_0, window_bounds = array<i64: 2, 24, 32>}, {pipeline_mode = #tpu.pipeline_mode<synchronous>, transform_indices = @transform_1, window_bounds = array<i64: 128, 48>}, {pipeline_mode = #tpu.pipeline_mode<synchronous>, transform_indices = @transform_2, window_bounds = array<i64: 1, 48>}, {pipeline_mode = #tpu.pipeline_mode<synchronous>, transform_indices = @transform_3, window_bounds = array<i64: 16, 48>}, {pipeline_mode = #tpu.pipeline_mode<synchronous>, transform_indices = @transform_4, window_bounds = array<i64: 48, 128>}, {pipeline_mode = #tpu.pipeline_mode<synchronous>, transform_indices = @transform_5, window_bounds = array<i64: 1, 128>}, {transform_indices = @transform_6, window_bounds = array<i64: 2, 128>}]} {
    %c0 = arith.constant 0 : index
    %c0_0 = arith.constant 0 : index
    %c0_1 = arith.constant 0 : index
    %0 = vector.load %arg1[%c0, %c0_0, %c0_1] : memref<2x24x32xf32, #tpu.memory_space<vmem>>, vector<2x24x32xf32>
    %c0_2 = arith.constant 0 : index
    %c0_3 = arith.constant 0 : index
    %1 = vector.load %arg2[%c0_2, %c0_3] : memref<128x48xf32, #tpu.memory_space<vmem>>, vector<128x48xf32>
    %2 = vector.extract_strided_slice %0 {offsets = [0, 0, 0], sizes = [2, 16, 32], strides = [1, 1, 1]} : vector<2x24x32xf32> to vector<2x16x32xf32>
    %3 = vector.shape_cast %2 : vector<2x16x32xf32> to vector<32x32xf32>
    %4 = vector.extract_strided_slice %1 {offsets = [0, 0], sizes = [32, 48], strides = [1, 1]} : vector<128x48xf32> to vector<32x48xf32>
    %cst = arith.constant dense<0.000000e+00> : vector<32x48xf32>
    %5 = tpu.matmul %3, %4, %cst {dimension_numbers = #tpu.dot_dimension_numbers<[1], [0], [0], [1], [0, 0, 1, 1], [], []>} : vector<32x32xf32>, vector<32x48xf32>, vector<32x48xf32> -> vector<32x48xf32>
    %6 = vector.extract_strided_slice %0 {offsets = [0, 1, 0], sizes = [2, 16, 32], strides = [1, 1, 1]} : vector<2x24x32xf32> to vector<2x16x32xf32>
    %7 = vector.shape_cast %6 : vector<2x16x32xf32> to vector<32x32xf32>
    %8 = vector.extract_strided_slice %1 {offsets = [32, 0], sizes = [32, 48], strides = [1, 1]} : vector<128x48xf32> to vector<32x48xf32>
    %cst_4 = arith.constant dense<0.000000e+00> : vector<32x48xf32>
    %9 = tpu.matmul %7, %8, %cst_4 {dimension_numbers = #tpu.dot_dimension_numbers<[1], [0], [0], [1], [0, 0, 1, 1], [], []>} : vector<32x32xf32>, vector<32x48xf32>, vector<32x48xf32> -> vector<32x48xf32>
    %10 = arith.addf %5, %9 : vector<32x48xf32>
    %11 = vector.extract_strided_slice %0 {offsets = [0, 2, 0], sizes = [2, 16, 32], strides = [1, 1, 1]} : vector<2x24x32xf32> to vector<2x16x32xf32>
    %12 = vector.shape_cast %11 : vector<2x16x32xf32> to vector<32x32xf32>
    %13 = vector.extract_strided_slice %1 {offsets = [64, 0], sizes = [32, 48], strides = [1, 1]} : vector<128x48xf32> to vector<32x48xf32>
    %cst_5 = arith.constant dense<0.000000e+00> : vector<32x48xf32>
    %14 = tpu.matmul %12, %13, %cst_5 {dimension_numbers = #tpu.dot_dimension_numbers<[1], [0], [0], [1], [0, 0, 1, 1], [], []>} : vector<32x32xf32>, vector<32x48xf32>, vector<32x48xf32> -> vector<32x48xf32>
    %15 = arith.addf %10, %14 : vector<32x48xf32>
    %16 = vector.extract_strided_slice %0 {offsets = [0, 3, 0], sizes = [2, 16, 32], strides = [1, 1, 1]} : vector<2x24x32xf32> to vector<2x16x32xf32>
    %17 = vector.shape_cast %16 : vector<2x16x32xf32> to vector<32x32xf32>
    %18 = vector.extract_strided_slice %1 {offsets = [96, 0], sizes = [32, 48], strides = [1, 1]} : vector<128x48xf32> to vector<32x48xf32>
    %cst_6 = arith.constant dense<0.000000e+00> : vector<32x48xf32>
    %19 = tpu.matmul %17, %18, %cst_6 {dimension_numbers = #tpu.dot_dimension_numbers<[1], [0], [0], [1], [0, 0, 1, 1], [], []>} : vector<32x32xf32>, vector<32x48xf32>, vector<32x48xf32> -> vector<32x48xf32>
    %20 = arith.addf %15, %19 : vector<32x48xf32>
    %c0_7 = arith.constant 0 : index
    %c0_8 = arith.constant 0 : index
    %21 = vector.load %arg3[%c0_7, %c0_8] : memref<1x48xf32, #tpu.memory_space<vmem>>, vector<1x48xf32>
    %22 = vector.broadcast %21 : vector<1x48xf32> to vector<32x48xf32>
    %23 = arith.addf %20, %22 : vector<32x48xf32>
    %cst_9 = arith.constant 0.000000e+00 : f32
    %24 = vector.broadcast %cst_9 : f32 to vector<32x48xf32>
    %25 = arith.cmpf ogt, %23, %24 : vector<32x48xf32>
    %cst_10 = arith.constant 2.000000e-01 : f32
    %26 = vector.broadcast %cst_10 : f32 to vector<32x48xf32>
    %27 = arith.mulf %26, %23 : vector<32x48xf32>
    %28 = arith.select %25, %23, %27 : vector<32x48xi1>, vector<32x48xf32>
    %29 = vector.shape_cast %28 : vector<32x48xf32> to vector<2x16x48xf32>
    %c0_11 = arith.constant 0 : index
    %c0_12 = arith.constant 0 : index
    %30 = vector.load %arg4[%c0_11, %c0_12] : memref<16x48xf32, #tpu.memory_space<vmem>>, vector<16x48xf32>
    %31 = vector.shape_cast %30 : vector<16x48xf32> to vector<1x16x48xf32>
    %32 = vector.broadcast %31 : vector<1x16x48xf32> to vector<2x16x48xf32>
    %33 = arith.addf %29, %32 : vector<2x16x48xf32>
    %cst_13 = arith.constant dense<0xFF800000> : vector<2x48xf32>
    %34 = vector.multi_reduction <maximumf>, %33, %cst_13 [1] : vector<2x16x48xf32> to vector<2x48xf32>
    %c0_14 = arith.constant 0 : index
    %c0_15 = arith.constant 0 : index
    %35 = vector.load %arg5[%c0_14, %c0_15] : memref<48x128xf32, #tpu.memory_space<vmem>>, vector<48x128xf32>
    %cst_16 = arith.constant dense<0.000000e+00> : vector<2x128xf32>
    %36 = tpu.matmul %34, %35, %cst_16 {dimension_numbers = #tpu.dot_dimension_numbers<[1], [0], [0], [1], [0, 0, 1, 1], [], []>} : vector<2x48xf32>, vector<48x128xf32>, vector<2x128xf32> -> vector<2x128xf32>
    %c0_17 = arith.constant 0 : index
    %c0_18 = arith.constant 0 : index
    %37 = vector.load %arg6[%c0_17, %c0_18] : memref<1x128xf32, #tpu.memory_space<vmem>>, vector<1x128xf32>
    %38 = vector.broadcast %37 : vector<1x128xf32> to vector<2x128xf32>
    %39 = arith.addf %36, %38 : vector<2x128xf32>
    %c0_19 = arith.constant 0 : index
    %c0_20 = arith.constant 0 : index
    %40 = vector.load %arg7[%c0_19, %c0_20] : memref<2x128xf32, #tpu.memory_space<vmem>>, vector<2x128xf32>
    tpu.vector_store %arg7[%c0_19, %c0_20], %39 {strides = array<i32>} : memref<2x128xf32, #tpu.memory_space<vmem>>, vector<2x128xf32>,
    return
  }
  func.func @transform_0(%arg0: i32) -> (i32, i32, i32) {
    %c0_i32 = arith.constant 0 : i32
    %c0_i32_0 = arith.constant 0 : i32
    %c0_i32_1 = arith.constant 0 : i32
    return %arg0, %c0_i32, %c0_i32_0 : i32, i32, i32
  }
  func.func @transform_1(%arg0: i32) -> (i32, i32) {
    %c0_i32 = arith.constant 0 : i32
    %c0_i32_0 = arith.constant 0 : i32
    %c0_i32_1 = arith.constant 0 : i32
    return %c0_i32, %c0_i32_0 : i32, i32
  }
  func.func @transform_2(%arg0: i32) -> (i32, i32) {
    %c0_i32 = arith.constant 0 : i32
    %c0_i32_0 = arith.constant 0 : i32
    %c0_i32_1 = arith.constant 0 : i32
    return %c0_i32, %c0_i32_0 : i32, i32
  }
  func.func @transform_3(%arg0: i32) -> (i32, i32) {
    %c0_i32 = arith.constant 0 : i32
    %c0_i32_0 = arith.constant 0 : i32
    %c0_i32_1 = arith.constant 0 : i32
    return %c0_i32, %c0_i32_0 : i32, i32
  }
  func.func @transform_4(%arg0: i32) -> (i32, i32) {
    %c0_i32 = arith.constant 0 : i32
    %c0_i32_0 = arith.constant 0 : i32
    %c0_i32_1 = arith.constant 0 : i32
    return %c0_i32, %c0_i32_0 : i32, i32
  }
  func.func @transform_5(%arg0: i32) -> (i32, i32) {
    %c0_i32 = arith.constant 0 : i32
    %c0_i32_0 = arith.constant 0 : i32
    %c0_i32_1 = arith.constant 0 : i32
    return %c0_i32, %c0_i32_0 : i32, i32
  }
  func.func @transform_6(%arg0: i32) -> (i32, i32) {
    %c0_i32 = arith.constant 0 : i32
    %c0_i32_0 = arith.constant 0 : i32
    return %arg0, %c0_i32 : i32, i32
  }
}

</mosaic_0001>

<llo_original>
// kernel: tpu_custom_call.1
$region0: #{tpu_custom_call.1}
  #allocation0 [shape = 'u32[]', space=smem, size = 0x4, offset = 0x4, fixed_abs, tag = 'smem constant byte address 0x4 - core index']
  #allocation1 [shape = 'u32[144,128]{1,0:T(1,128)}', space=vmem, size = 0x12000, scoped, tag = 'internal scratch']
  %s0 = inlined_call_operand.vmem [shape: f32[2,24,32], index: 0, kind: input, shape index: {}]
  %s1 = inlined_call_operand.vmem [shape: f32[128,48], index: 1, kind: input, shape index: {}]
  %s2 = inlined_call_operand.vmem [shape: f32[1,48], index: 2, kind: input, shape index: {}]
  %s3 = inlined_call_operand.vmem [shape: f32[16,48], index: 3, kind: input, shape index: {}]
  %s4 = inlined_call_operand.vmem [shape: f32[48,128], index: 4, kind: input, shape index: {}]
  %s5 = inlined_call_operand.vmem [shape: f32[1,128], index: 5, kind: input, shape index: {}]
  %s6 = inlined_call_operand.hbm [shape: f32[2,128], index: 6, kind: output, shape index: {}]
  %s7 = sld [smem:[#allocation0]]
  $region34: #{tpu_custom_call.1} parent=0
    _
  %s9 = ssub.s32 1, %s7
  %s10 = scalar_select 0, %s9, %s7
  $region1: #{tpu_custom_call.1} parent=0
    #allocation2 [shape = 'u8[1024]{0}', space=vmem, size = 0x400, scoped, tag = 'output window, operand 0, single buffered']
    #allocation3 [shape = 's32[1]{0}', space=sflag, size = 0x4, scoped, tag = 'scoped memory for tpu_custom_call.1']
    %11 = vsyncpa [#allocation3], 0
    // Predicated region
    $region2: #{tpu_custom_call.1} parent=1 // pred_check
      _
    $region3: #{tpu_custom_call.1} parent=1 // pred_check_branch
      %13 = sbr.rel (0) target = $region5
    $region4: #{tpu_custom_call.1} parent=1 // pred_region
      _
    $region5: #{tpu_custom_call.1} parent=1 // pred_fallthru
      _
    // Predicated region
    $region6: #{tpu_custom_call.1} parent=1 // pred_check
      _
    $region7: #{tpu_custom_call.1} parent=1 // pred_check_branch
      %15 = sbr.rel (0) target = $region9
    $region8: #{tpu_custom_call.1} parent=1 // pred_region
      _
    $region9: #{tpu_custom_call.1} parent=1 // pred_fallthru
      _
    // Predicated region
    $region10: #{tpu_custom_call.1} parent=1 // pred_check
      _
    $region11: #{tpu_custom_call.1} parent=1 // pred_check_branch
      %17 = sbr.rel (0) target = $region13
    $region12: #{tpu_custom_call.1} parent=1 // pred_region
      _
    $region13: #{tpu_custom_call.1} parent=1 // pred_fallthru
      _
    // Predicated region
    $region14: #{tpu_custom_call.1} parent=1 // pred_check
      _
    $region15: #{tpu_custom_call.1} parent=1 // pred_check_branch
      %19 = sbr.rel (0) target = $region17
    $region16: #{tpu_custom_call.1} parent=1 // pred_region
      _
    $region17: #{tpu_custom_call.1} parent=1 // pred_fallthru
      _
    // Predicated region
    $region18: #{tpu_custom_call.1} parent=1 // pred_check
      _
    $region19: #{tpu_custom_call.1} parent=1 // pred_check_branch
      %21 = sbr.rel (0) target = $region21
    $region20: #{tpu_custom_call.1} parent=1 // pred_region
      _
    $region21: #{tpu_custom_call.1} parent=1 // pred_fallthru
      _
    // Predicated region
    $region22: #{tpu_custom_call.1} parent=1 // pred_check
      _
    $region23: #{tpu_custom_call.1} parent=1 // pred_check_branch
      %23 = sbr.rel (0) target = $region25
    $region24: #{tpu_custom_call.1} parent=1 // pred_region
      _
    $region25: #{tpu_custom_call.1} parent=1 // pred_fallthru
      _
    %v24 = vld [vmem:[%s0] sm:$0xff]
    %v25 = vld [vmem:[%s0 + $0x8] sm:$0xff]
    %v26 = vld [vmem:[%s0 + $0x10] sm:$0xff]
    %v27 = vld [vmem:[%s0 + $0x18] sm:$0xff]
    %v28 = vld [vmem:[%s0 + $0x20] sm:$0xff]
    %v29 = vld [vmem:[%s0 + $0x28] sm:$0xff]
    %v30 = vld [vmem:[%s1] sm:$0xff]
    %v31 = vld [vmem:[%s1 + $0x8] sm:$0xff]
    %v32 = vld [vmem:[%s1 + $0x10] sm:$0xff]
    %v33 = vld [vmem:[%s1 + $0x18] sm:$0xff]
    %v34 = vld [vmem:[%s1 + $0x20] sm:$0xff]
    %v35 = vld [vmem:[%s1 + $0x28] sm:$0xff]
    %v36 = vld [vmem:[%s1 + $0x30] sm:$0xff]
    %v37 = vld [vmem:[%s1 + $0x38] sm:$0xff]
    %v38 = vld [vmem:[%s1 + $0x40] sm:$0xff]
    %v39 = vld [vmem:[%s1 + $0x48] sm:$0xff]
    %v40 = vld [vmem:[%s1 + $0x50] sm:$0xff]
    %v41 = vld [vmem:[%s1 + $0x58] sm:$0xff]
    %v42 = vld [vmem:[%s1 + $0x60] sm:$0xff]
    %v43 = vld [vmem:[%s1 + $0x68] sm:$0xff]
    %v44 = vld [vmem:[%s1 + $0x70] sm:$0xff]
    %v45 = vld [vmem:[%s1 + $0x78] sm:$0xff]
    %vm52 = vcmask 1046528
    %v53 = vrot.slane %v24, 1
    %v54 = vrot.slane %v25, 1
    %v55 = vsel %vm52, %v53, %v54
    %v56 = vrot.slane %v26, 1
    %v57 = vsel %vm52, %v54, %v56
    %v58 = vrot.slane %v27, 1
    %v59 = vrot.slane %v28, 1
    %v60 = vsel %vm52, %v58, %v59
    %v61 = vrot.slane %v29, 1
    %v62 = vsel %vm52, %v59, %v61
    %vm63 = vcmask 261120
    %v64 = vsel %vm63, %v55, 0
    %v66 = vsel %vm63, %v57, 0
    %v68 = vsel %vm63, %v60, 0
    %v70 = vsel %vm63, %v62, 0
    %72 = vmatprep.subr.mxu0 0.0
    %73 = vmatpush1.msra.mxu0 0.0
    %74 = vmatprep.subr.mxu0 0.0
    %75 = vmatpush1.msra.mxu0 0.0
    %76 = vmatprep.subr.mxu0 0.0
    %77 = vmatpush1.msra.mxu0 0.0
    %78 = vmatprep.subr.mxu0 0.0
    %79 = vmatpush1.msra.mxu0 0.0
    %80 = vmatprep.subr.mxu0 0.0
    %81 = vmatpush1.msra.mxu0 0.0
    %82 = vmatprep.subr.mxu0 0.0
    %83 = vmatpush1.msra.mxu0 0.0
    %84 = vmatprep.subr.mxu0 0.0
    %85 = vmatpush1.msra.mxu0 0.0
    %86 = vmatprep.subr.mxu0 0.0
    %87 = vmatpush1.msra.mxu0 0.0
    %88 = vmatprep.subr.mxu0 0.0
    %89 = vmatpush1.msra.mxu0 0.0
    %90 = vmatprep.subr.mxu0 0.0
    %91 = vmatpush1.msra.mxu0 0.0
    %92 = vmatprep.subr.mxu0 0.0
    %93 = vmatpush1.msra.mxu0 0.0
    %94 = vmatprep.subr.mxu0 0.0
    %95 = vmatpush1.msra.mxu0 0.0
    %96 = vmatprep.subr.mxu0 0.0
    %97 = vmatpush1.msra.mxu0 %v37
    %98 = vmatprep.subr.mxu0 0.0
    %99 = vmatpush1.msra.mxu0 %v36
    %100 = vmatprep.subr.mxu0 0.0
    %101 = vmatpush1.msra.mxu0 %v35
    %102 = vmatprep.subr.mxu0 0.0
    %103 = vmatpush1.msra.mxu0 %v34
    %104 = vmatprep.subr.mxu0 0.0
    %105 = vmatpush2.msra.mxu0 0.0
    %106 = vmatprep.subr.mxu0 0.0
    %107 = vmatpush2.msra.mxu0 0.0
    %108 = vmatprep.subr.mxu0 0.0
    %109 = vmatpush2.msra.mxu0 0.0
    %110 = vmatprep.subr.mxu0 0.0
    %111 = vmatpush2.msra.mxu0 0.0
    %112 = vmatprep.subr.mxu0 0.0
    %113 = vmatpush2.msra.mxu0 0.0
    %114 = vmatprep.subr.mxu0 0.0
    %115 = vmatpush2.msra.mxu0 0.0
    %116 = vmatprep.subr.mxu0 0.0
    %117 = vmatpush2.msra.mxu0 0.0
    %118 = vmatprep.subr.mxu0 0.0
    %119 = vmatpush2.msra.mxu0 0.0
    %120 = vmatprep.subr.mxu0 0.0
    %121 = vmatpush2.msra.mxu0 0.0
    %122 = vmatprep.subr.mxu0 0.0
    %123 = vmatpush2.msra.mxu0 0.0
    %124 = vmatprep.subr.mxu0 0.0
    %125 = vmatpush2.msra.mxu0 0.0
    %126 = vmatprep.subr.mxu0 0.0
    %127 = vmatpush2.msra.mxu0 0.0
    %128 = vmatprep.subr.mxu0 0.0
    %129 = vmatpush2.msra.mxu0 0.0
    %130 = vmatprep.subr.mxu0 0.0
    %131 = vmatpush2.msra.mxu0 0.0
    %132 = vmatprep.subr.mxu0 0.0
    %133 = vmatpush2.msra.mxu0 0.0
    %134 = vmatprep.subr.mxu0 0.0
    %135 = vmatpush2.msra.mxu0 0.0
    %136 = vmatprep.mubr.f32.mxu0 0.0
    %137 = vmatmul.mubr.f32.gmra.mxu0 %v64
    %v138 = vpop.f32.mrf.mxu0
    %v139 = vadd.f32 0.0, %v138
    %v140 = vpop.f32.mrf.mxu0
    %141 = vmatprep.mubr.f32.mxu0 0.0
    %142 = vmatmul.mubr.f32.gmra.mxu0 %v66
    %v143 = vpop.f32.mrf.mxu0
    %v144 = vadd.f32 0.0, %v143
    %v145 = vpop.f32.mrf.mxu0
    %146 = vmatprep.mubr.f32.mxu0 0.0
    %147 = vmatmul.mubr.f32.gmra.mxu0 %v68
    %v148 = vpop.f32.mrf.mxu0
    %v149 = vadd.f32 0.0, %v148
    %v150 = vpop.f32.mrf.mxu0
    %151 = vmatprep.mubr.f32.mxu0 0.0
    %152 = vmatmul.mubr.f32.gmra.mxu0 %v70
    %v153 = vpop.f32.mrf.mxu0
    %v154 = vadd.f32 0.0, %v153
    %v155 = vpop.f32.mrf.mxu0
    %156 = vdwg.mxu0
    %v157 = vsel %vm63, %v24, 0
    %v159 = vsel %vm63, %v25, 0
    %v161 = vsel %vm63, %v27, 0
    %v163 = vsel %vm63, %v28, 0
    %165 = vmatprep.subr.mxu0 0.0
    %166 = vmatpush1.msra.mxu0 0.0
    %167 = vmatprep.subr.mxu0 0.0
    %168 = vmatpush1.msra.mxu0 0.0
    %169 = vmatprep.subr.mxu0 0.0
    %170 = vmatpush1.msra.mxu0 0.0
    %171 = vmatprep.subr.mxu0 0.0
    %172 = vmatpush1.msra.mxu0 0.0
    %173 = vmatprep.subr.mxu0 0.0
    %174 = vmatpush1.msra.mxu0 0.0
    %175 = vmatprep.subr.mxu0 0.0
    %176 = vmatpush1.msra.mxu0 0.0
    %177 = vmatprep.subr.mxu0 0.0
    %178 = vmatpush1.msra.mxu0 0.0
    %179 = vmatprep.subr.mxu0 0.0
    %180 = vmatpush1.msra.mxu0 0.0
    %181 = vmatprep.subr.mxu0 0.0
    %182 = vmatpush1.msra.mxu0 0.0
    %183 = vmatprep.subr.mxu0 0.0
    %184 = vmatpush1.msra.mxu0 0.0
    %185 = vmatprep.subr.mxu0 0.0
    %186 = vmatpush1.msra.mxu0 0.0
    %187 = vmatprep.subr.mxu0 0.0
    %188 = vmatpush1.msra.mxu0 0.0
    %189 = vmatprep.subr.mxu0 0.0
    %190 = vmatpush1.msra.mxu0 %v33
    %191 = vmatprep.subr.mxu0 0.0
    %192 = vmatpush1.msra.mxu0 %v32
    %193 = vmatprep.subr.mxu0 0.0
    %194 = vmatpush1.msra.mxu0 %v31
    %195 = vmatprep.subr.mxu0 0.0
    %196 = vmatpush1.msra.mxu0 %v30
    %197 = vmatprep.subr.mxu0 0.0
    %198 = vmatpush2.msra.mxu0 0.0
    %199 = vmatprep.subr.mxu0 0.0
    %200 = vmatpush2.msra.mxu0 0.0
    %201 = vmatprep.subr.mxu0 0.0
    %202 = vmatpush2.msra.mxu0 0.0
    %203 = vmatprep.subr.mxu0 0.0
    %204 = vmatpush2.msra.mxu0 0.0
    %205 = vmatprep.subr.mxu0 0.0
    %206 = vmatpush2.msra.mxu0 0.0
    %207 = vmatprep.subr.mxu0 0.0
    %208 = vmatpush2.msra.mxu0 0.0
    %209 = vmatprep.subr.mxu0 0.0
    %210 = vmatpush2.msra.mxu0 0.0
    %211 = vmatprep.subr.mxu0 0.0
    %212 = vmatpush2.msra.mxu0 0.0
    %213 = vmatprep.subr.mxu0 0.0
    %214 = vmatpush2.msra.mxu0 0.0
    %215 = vmatprep.subr.mxu0 0.0
    %216 = vmatpush2.msra.mxu0 0.0
    %217 = vmatprep.subr.mxu0 0.0
    %218 = vmatpush2.msra.mxu0 0.0
    %219 = vmatprep.subr.mxu0 0.0
    %220 = vmatpush2.msra.mxu0 0.0
    %221 = vmatprep.subr.mxu0 0.0
    %222 = vmatpush2.msra.mxu0 0.0
    %223 = vmatprep.subr.mxu0 0.0
    %224 = vmatpush2.msra.mxu0 0.0
    %225 = vmatprep.subr.mxu0 0.0
    %226 = vmatpush2.msra.mxu0 0.0
    %227 = vmatprep.subr.mxu0 0.0
    %228 = vmatpush2.msra.mxu0 0.0
    %229 = vmatprep.mubr.f32.mxu0 0.0
    %230 = vmatmul.mubr.f32.gmra.mxu0 %v157
    %v231 = vpop.f32.mrf.mxu0
    %v232 = vadd.f32 %v139, %v231
    %v233 = vpop.f32.mrf.mxu0
    %234 = vmatprep.mubr.f32.mxu0 0.0
    %235 = vmatmul.mubr.f32.gmra.mxu0 %v159
    %v236 = vpop.f32.mrf.mxu0
    %v237 = vadd.f32 %v144, %v236
    %v238 = vpop.f32.mrf.mxu0
    %239 = vmatprep.mubr.f32.mxu0 0.0
    %240 = vmatmul.mubr.f32.gmra.mxu0 %v161
    %v241 = vpop.f32.mrf.mxu0
    %v242 = vadd.f32 %v149, %v241
    %v243 = vpop.f32.mrf.mxu0
    %244 = vmatprep.mubr.f32.mxu0 0.0
    %245 = vmatmul.mubr.f32.gmra.mxu0 %v163
    %v246 = vpop.f32.mrf.mxu0
    %v247 = vadd.f32 %v154, %v246
    %v248 = vpop.f32.mrf.mxu0
    %249 = vdwg.mxu0
    %vm250 = vcmask 1045504
    %v251 = vrot.slane %v24, 2
    %v252 = vrot.slane %v25, 2
    %v253 = vsel %vm250, %v251, %v252
    %v254 = vrot.slane %v26, 2
    %v255 = vsel %vm250, %v252, %v254
    %v256 = vrot.slane %v27, 2
    %v257 = vrot.slane %v28, 2
    %v258 = vsel %vm250, %v256, %v257
    %v259 = vrot.slane %v29, 2
    %v260 = vsel %vm250, %v257, %v259
    %v261 = vsel %vm63, %v253, 0
    %v263 = vsel %vm63, %v255, 0
    %v265 = vsel %vm63, %v258, 0
    %v267 = vsel %vm63, %v260, 0
    %269 = vmatprep.subr.mxu0 0.0
    %270 = vmatpush1.msra.mxu0 0.0
    %271 = vmatprep.subr.mxu0 0.0
    %272 = vmatpush1.msra.mxu0 0.0
    %273 = vmatprep.subr.mxu0 0.0
    %274 = vmatpush1.msra.mxu0 0.0
    %275 = vmatprep.subr.mxu0 0.0
    %276 = vmatpush1.msra.mxu0 0.0
    %277 = vmatprep.subr.mxu0 0.0
    %278 = vmatpush1.msra.mxu0 0.0
    %279 = vmatprep.subr.mxu0 0.0
    %280 = vmatpush1.msra.mxu0 0.0
    %281 = vmatprep.subr.mxu0 0.0
    %282 = vmatpush1.msra.mxu0 0.0
    %283 = vmatprep.subr.mxu0 0.0
    %284 = vmatpush1.msra.mxu0 0.0
    %285 = vmatprep.subr.mxu0 0.0
    %286 = vmatpush1.msra.mxu0 0.0
    %287 = vmatprep.subr.mxu0 0.0
    %288 = vmatpush1.msra.mxu0 0.0
    %289 = vmatprep.subr.mxu0 0.0
    %290 = vmatpush1.msra.mxu0 0.0
    %291 = vmatprep.subr.mxu0 0.0
    %292 = vmatpush1.msra.mxu0 0.0
    %293 = vmatprep.subr.mxu0 0.0
    %294 = vmatpush1.msra.mxu0 %v41
    %295 = vmatprep.subr.mxu0 0.0
    %296 = vmatpush1.msra.mxu0 %v40
    %297 = vmatprep.subr.mxu0 0.0
    %298 = vmatpush1.msra.mxu0 %v39
    %299 = vmatprep.subr.mxu0 0.0
    %300 = vmatpush1.msra.mxu0 %v38
    %301 = vmatprep.subr.mxu0 0.0
    %302 = vmatpush2.msra.mxu0 0.0
    %303 = vmatprep.subr.mxu0 0.0
    %304 = vmatpush2.msra.mxu0 0.0
    %305 = vmatprep.subr.mxu0 0.0
    %306 = vmatpush2.msra.mxu0 0.0
    %307 = vmatprep.subr.mxu0 0.0
    %308 = vmatpush2.msra.mxu0 0.0
    %309 = vmatprep.subr.mxu0 0.0
    %310 = vmatpush2.msra.mxu0 0.0
    %311 = vmatprep.subr.mxu0 0.0
    %312 = vmatpush2.msra.mxu0 0.0
    %313 = vmatprep.subr.mxu0 0.0
    %314 = vmatpush2.msra.mxu0 0.0
    %315 = vmatprep.subr.mxu0 0.0
    %316 = vmatpush2.msra.mxu0 0.0
    %317 = vmatprep.subr.mxu0 0.0
    %318 = vmatpush2.msra.mxu0 0.0
    %319 = vmatprep.subr.mxu0 0.0
    %320 = vmatpush2.msra.mxu0 0.0
    %321 = vmatprep.subr.mxu0 0.0
    %322 = vmatpush2.msra.mxu0 0.0
    %323 = vmatprep.subr.mxu0 0.0
    %324 = vmatpush2.msra.mxu0 0.0
    %325 = vmatprep.subr.mxu0 0.0
    %326 = vmatpush2.msra.mxu0 0.0
    %327 = vmatprep.subr.mxu0 0.0
    %328 = vmatpush2.msra.mxu0 0.0
    %329 = vmatprep.subr.mxu0 0.0
    %330 = vmatpush2.msra.mxu0 0.0
    %331 = vmatprep.subr.mxu0 0.0
    %332 = vmatpush2.msra.mxu0 0.0
    %333 = vmatprep.mubr.f32.mxu0 0.0
    %334 = vmatmul.mubr.f32.gmra.mxu0 %v261
    %v335 = vpop.f32.mrf.mxu0
    %v336 = vadd.f32 0.0, %v335
    %v337 = vpop.f32.mrf.mxu0
    %338 = vmatprep.mubr.f32.mxu0 0.0
    %339 = vmatmul.mubr.f32.gmra.mxu0 %v263
    %v340 = vpop.f32.mrf.mxu0
    %v341 = vadd.f32 0.0, %v340
    %v342 = vpop.f32.mrf.mxu0
    %343 = vmatprep.mubr.f32.mxu0 0.0
    %344 = vmatmul.mubr.f32.gmra.mxu0 %v265
    %v345 = vpop.f32.mrf.mxu0
    %v346 = vadd.f32 0.0, %v345
    %v347 = vpop.f32.mrf.mxu0
    %348 = vmatprep.mubr.f32.mxu0 0.0
    %349 = vmatmul.mubr.f32.gmra.mxu0 %v267
    %v350 = vpop.f32.mrf.mxu0
    %v351 = vadd.f32 0.0, %v350
    %v352 = vpop.f32.mrf.mxu0
    %353 = vdwg.mxu0
    %v354 = vadd.f32 %v232, %v336
    %v355 = vadd.f32 %v237, %v341
    %v356 = vadd.f32 %v242, %v346
    %v357 = vadd.f32 %v247, %v351
    %vm358 = vcmask 1044480
    %v359 = vrot.slane %v24, 3
    %v360 = vrot.slane %v25, 3
    %v361 = vsel %vm358, %v359, %v360
    %v362 = vrot.slane %v26, 3
    %v363 = vsel %vm358, %v360, %v362
    %v364 = vrot.slane %v27, 3
    %v365 = vrot.slane %v28, 3
    %v366 = vsel %vm358, %v364, %v365
    %v367 = vrot.slane %v29, 3
    %v368 = vsel %vm358, %v365, %v367
    %v369 = vsel %vm63, %v361, 0
    %v371 = vsel %vm63, %v363, 0
    %v373 = vsel %vm63, %v366, 0
    %v375 = vsel %vm63, %v368, 0
    %377 = vmatprep.subr.mxu0 0.0
    %378 = vmatpush1.msra.mxu0 0.0
    %379 = vmatprep.subr.mxu0 0.0
    %380 = vmatpush1.msra.mxu0 0.0
    %381 = vmatprep.subr.mxu0 0.0
    %382 = vmatpush1.msra.mxu0 0.0
    %383 = vmatprep.subr.mxu0 0.0
    %384 = vmatpush1.msra.mxu0 0.0
    %385 = vmatprep.subr.mxu0 0.0
    %386 = vmatpush1.msra.mxu0 0.0
    %387 = vmatprep.subr.mxu0 0.0
    %388 = vmatpush1.msra.mxu0 0.0
    %389 = vmatprep.subr.mxu0 0.0
    %390 = vmatpush1.msra.mxu0 0.0
    %391 = vmatprep.subr.mxu0 0.0
    %392 = vmatpush1.msra.mxu0 0.0
    %393 = vmatprep.subr.mxu0 0.0
    %394 = vmatpush1.msra.mxu0 0.0
    %395 = vmatprep.subr.mxu0 0.0
    %396 = vmatpush1.msra.mxu0 0.0
    %397 = vmatprep.subr.mxu0 0.0
    %398 = vmatpush1.msra.mxu0 0.0
    %399 = vmatprep.subr.mxu0 0.0
    %400 = vmatpush1.msra.mxu0 0.0
    %401 = vmatprep.subr.mxu0 0.0
    %402 = vmatpush1.msra.mxu0 %v45
    %403 = vmatprep.subr.mxu0 0.0
    %404 = vmatpush1.msra.mxu0 %v44
    %405 = vmatprep.subr.mxu0 0.0
    %406 = vmatpush1.msra.mxu0 %v43
    %407 = vmatprep.subr.mxu0 0.0
    %408 = vmatpush1.msra.mxu0 %v42
    %409 = vmatprep.subr.mxu0 0.0
    %410 = vmatpush2.msra.mxu0 0.0
    %411 = vmatprep.subr.mxu0 0.0
    %412 = vmatpush2.msra.mxu0 0.0
    %413 = vmatprep.subr.mxu0 0.0
    %414 = vmatpush2.msra.mxu0 0.0
    %415 = vmatprep.subr.mxu0 0.0
    %416 = vmatpush2.msra.mxu0 0.0
    %417 = vmatprep.subr.mxu0 0.0
    %418 = vmatpush2.msra.mxu0 0.0
    %419 = vmatprep.subr.mxu0 0.0
    %420 = vmatpush2.msra.mxu0 0.0
    %421 = vmatprep.subr.mxu0 0.0
    %422 = vmatpush2.msra.mxu0 0.0
    %423 = vmatprep.subr.mxu0 0.0
    %424 = vmatpush2.msra.mxu0 0.0
    %425 = vmatprep.subr.mxu0 0.0
    %426 = vmatpush2.msra.mxu0 0.0
    %427 = vmatprep.subr.mxu0 0.0
    %428 = vmatpush2.msra.mxu0 0.0
    %429 = vmatprep.subr.mxu0 0.0
    %430 = vmatpush2.msra.mxu0 0.0
    %431 = vmatprep.subr.mxu0 0.0
    %432 = vmatpush2.msra.mxu0 0.0
    %433 = vmatprep.subr.mxu0 0.0
    %434 = vmatpush2.msra.mxu0 0.0
    %435 = vmatprep.subr.mxu0 0.0
    %436 = vmatpush2.msra.mxu0 0.0
    %437 = vmatprep.subr.mxu0 0.0
    %438 = vmatpush2.msra.mxu0 0.0
    %439 = vmatprep.subr.mxu0 0.0
    %440 = vmatpush2.msra.mxu0 0.0
    %441 = vmatprep.mubr.f32.mxu0 0.0
    %442 = vmatmul.mubr.f32.gmra.mxu0 %v369
    %v443 = vpop.f32.mrf.mxu0
    %v444 = vadd.f32 0.0, %v443
    %v445 = vpop.f32.mrf.mxu0
    %446 = vmatprep.mubr.f32.mxu0 0.0
    %447 = vmatmul.mubr.f32.gmra.mxu0 %v371
    %v448 = vpop.f32.mrf.mxu0
    %v449 = vadd.f32 0.0, %v448
    %v450 = vpop.f32.mrf.mxu0
    %451 = vmatprep.mubr.f32.mxu0 0.0
    %452 = vmatmul.mubr.f32.gmra.mxu0 %v373
    %v453 = vpop.f32.mrf.mxu0
    %v454 = vadd.f32 0.0, %v453
    %v455 = vpop.f32.mrf.mxu0
    %456 = vmatprep.mubr.f32.mxu0 0.0
    %457 = vmatmul.mubr.f32.gmra.mxu0 %v375
    %v458 = vpop.f32.mrf.mxu0
    %v459 = vadd.f32 0.0, %v458
    %v460 = vpop.f32.mrf.mxu0
    %461 = vdwg.mxu0
    %v462 = vadd.f32 %v354, %v444
    %v463 = vadd.f32 %v355, %v449
    %v464 = vadd.f32 %v356, %v454
    %v465 = vadd.f32 %v357, %v459
    %v466 = vld [vmem:[%s2] sm:$0x1]
    %v468 = vlaneseq
    %v469 = vshrl.u32 %v468, 7
    %v470 = vsub.s32 0, %v469
    %v471 = vrot.slane %v466, %v470
    %v473 = vadd.f32 %v462, %v471
    %v474 = vadd.f32 %v463, %v471
    %v475 = vadd.f32 %v464, %v471
    %v476 = vadd.f32 %v465, %v471
    %vm477 = vcmp.gt.f32.partialorder %v473, 0.0
    %vm478 = vcmp.gt.f32.partialorder %v474, 0.0
    %vm479 = vcmp.gt.f32.partialorder %v475, 0.0
    %vm480 = vcmp.gt.f32.partialorder %v476, 0.0
    %v481 = vmul.f32 %v473, 0.2
    %v482 = vmul.f32 %v474, 0.2
    %v483 = vmul.f32 %v475, 0.2
    %v484 = vmul.f32 %v476, 0.2
    %v485 = vsel %vm477, %v473, %v481
    %v486 = vsel %vm478, %v474, %v482
    %v487 = vsel %vm479, %v475, %v483
    %v488 = vsel %vm480, %v476, %v484
    %v489 = vld [vmem:[%s3] sm:$0xff]
    %v490 = vld [vmem:[%s3 + $0x8] sm:$0xff]
    %v491 = vadd.f32 %v485, %v489
    %v492 = vadd.f32 %v486, %v490
    %v493 = vadd.f32 %v487, %v489
    %v494 = vadd.f32 %v488, %v490
    %vm495 = vcmask 392192
    %v496 = vsel %vm495, %v491, -inf
    %v497 = vsel %vm495, %v492, -inf
    %v498 = vmax.f32 %v496, %v497
    %v499 = vrot.slane %v498, 4
    %v500 = vmax.f32 %v498, %v499
    %v501 = vrot.slane %v500, 2
    %v502 = vmax.f32 %v500, %v501
    %v503 = vrot.slane %v502, 1
    %v504 = vmax.f32 %v502, %v503
    %v505 = vsel %vm495, %v493, -inf
    %v506 = vsel %vm495, %v494, -inf
    %v507 = vmax.f32 %v505, %v506
    %v508 = vrot.slane %v507, 4
    %v509 = vmax.f32 %v507, %v508
    %v510 = vrot.slane %v509, 2
    %v511 = vmax.f32 %v509, %v510
    %v512 = vrot.slane %v511, 1
    %v513 = vmax.f32 %v511, %v512
    %v514 = vld [vmem:[%s4] sm:$0xff]
    %v515 = vld [vmem:[%s4 + $0x8] sm:$0xff]
    %v516 = vld [vmem:[%s4 + $0x10] sm:$0xff]
    %v517 = vld [vmem:[%s4 + $0x18] sm:$0xff]
    %v518 = vld [vmem:[%s4 + $0x20] sm:$0xff]
    %v519 = vld [vmem:[%s4 + $0x28] sm:$0xff]
    %v520 = vld [vmem:[%s5] sm:$0x1]
    %v522 = vlaneseq
    %v523 = vshrl.u32 %v522, 7
    %v524 = vsub.s32 0, %v523
    %v525 = vrot.slane %v520, %v524
    %vm529 = vcmask 1041409
    %v530 = vsel %vm529, %v513, %v504
    %v531 = vsel %vm495, %v530, 0
    %533 = vmatprep.subr.mxu0 0.0
    %534 = vmatpush1.msra.mxu0 0.0
    %535 = vmatprep.subr.mxu0 0.0
    %536 = vmatpush1.msra.mxu0 0.0
    %537 = vmatprep.subr.mxu0 0.0
    %538 = vmatpush1.msra.mxu0 0.0
    %539 = vmatprep.subr.mxu0 0.0
    %540 = vmatpush1.msra.mxu0 0.0
    %541 = vmatprep.subr.mxu0 0.0
    %542 = vmatpush1.msra.mxu0 0.0
    %543 = vmatprep.subr.mxu0 0.0
    %544 = vmatpush1.msra.mxu0 0.0
    %545 = vmatprep.subr.mxu0 0.0
    %546 = vmatpush1.msra.mxu0 0.0
    %547 = vmatprep.subr.mxu0 0.0
    %548 = vmatpush1.msra.mxu0 0.0
    %549 = vmatprep.subr.mxu0 0.0
    %550 = vmatpush1.msra.mxu0 0.0
    %551 = vmatprep.subr.mxu0 0.0
    %552 = vmatpush1.msra.mxu0 0.0
    %553 = vmatprep.subr.mxu0 0.0
    %554 = vmatpush1.msra.mxu0 %v519
    %555 = vmatprep.subr.mxu0 0.0
    %556 = vmatpush1.msra.mxu0 %v518
    %557 = vmatprep.subr.mxu0 0.0
    %558 = vmatpush1.msra.mxu0 %v517
    %559 = vmatprep.subr.mxu0 0.0
    %560 = vmatpush1.msra.mxu0 %v516
    %561 = vmatprep.subr.mxu0 0.0
    %562 = vmatpush1.msra.mxu0 %v515
    %563 = vmatprep.subr.mxu0 0.0
    %564 = vmatpush1.msra.mxu0 %v514
    %565 = vmatprep.subr.mxu0 0.0
    %566 = vmatpush2.msra.mxu0 0.0
    %567 = vmatprep.subr.mxu0 0.0
    %568 = vmatpush2.msra.mxu0 0.0
    %569 = vmatprep.subr.mxu0 0.0
    %570 = vmatpush2.msra.mxu0 0.0
    %571 = vmatprep.subr.mxu0 0.0
    %572 = vmatpush2.msra.mxu0 0.0
    %573 = vmatprep.subr.mxu0 0.0
    %574 = vmatpush2.msra.mxu0 0.0
    %575 = vmatprep.subr.mxu0 0.0
    %576 = vmatpush2.msra.mxu0 0.0
    %577 = vmatprep.subr.mxu0 0.0
    %578 = vmatpush2.msra.mxu0 0.0
    %579 = vmatprep.subr.mxu0 0.0
    %580 = vmatpush2.msra.mxu0 0.0
    %581 = vmatprep.subr.mxu0 0.0
    %582 = vmatpush2.msra.mxu0 0.0
    %583 = vmatprep.subr.mxu0 0.0
    %584 = vmatpush2.msra.mxu0 0.0
    %585 = vmatprep.subr.mxu0 0.0
    %586 = vmatpush2.msra.mxu0 0.0
    %587 = vmatprep.subr.mxu0 0.0
    %588 = vmatpush2.msra.mxu0 0.0
    %589 = vmatprep.subr.mxu0 0.0
    %590 = vmatpush2.msra.mxu0 0.0
    %591 = vmatprep.subr.mxu0 0.0
    %592 = vmatpush2.msra.mxu0 0.0
    %593 = vmatprep.subr.mxu0 0.0
    %594 = vmatpush2.msra.mxu0 0.0
    %595 = vmatprep.subr.mxu0 0.0
    %596 = vmatpush2.msra.mxu0 0.0
    %597 = vmatprep.mubr.f32.mxu0 0.0
    %598 = vmatmul.mubr.f32.gmra.mxu0 %v531
    %v599 = vpop.f32.mrf.mxu0
    %v600 = vadd.f32 %v525, %v599
    %v601 = vpop.f32.mrf.mxu0
    %602 = vdwg.mxu0
    %603 = vst [vmem:[#allocation2] sm:$0x3] %v600
    // Predicated region
    $region26: #{tpu_custom_call.1} parent=1 // pred_check
      _
    $region27: #{tpu_custom_call.1} parent=1 // pred_check_branch
      %605 = sbr.rel (0) target = $region29
    $region28: #{tpu_custom_call.1} parent=1 // pred_region
      %s607 = ssub.s32 32, 32
      %608 = vsyncadd [#allocation3], %s607
      %s610 = sshll.u32 [#allocation2], 4
      %s611 = int_to_ptr.vmem [resolvable:$true] %s610
      %613 = dma.vmem_to_hbm [thread:$0]  %s611, 32, %s6, [#allocation3]
    $region29: #{tpu_custom_call.1} parent=1 // pred_fallthru
      _
    // Predicated region
    $region30: #{tpu_custom_call.1} parent=1 // pred_check
      _
    $region31: #{tpu_custom_call.1} parent=1 // pred_check_branch
      %615 = sbr.rel (0) target = $region33
    $region32: #{tpu_custom_call.1} parent=1 // pred_region
      %616 = dma.done [#allocation3], 32
    $region33: #{tpu_custom_call.1} parent=1 // pred_fallthru
      _
    %617 = vsyncpa [#allocation3], 1

</llo_original>
